<compile_context>
chip_gen: v6e
topology: v6e:2x2x1
jax: 0.10.0
libtpu: 0.0.40
codegen_flags: <defaults>
</compile_context>

<pallas_src>
import functools

import jax
import jax.numpy as jnp
import numpy as np
from jax.experimental import pallas as pl
from jax.experimental.pallas import tpu as pltpu


def _round_up(a: int, m: int) -> int:
    return (a + m - 1) // m * m


def _interp_matrix_np(in_size: int, out_size: int) -> np.ndarray:
    """Row-interpolation matrix for bilinear upsampling, align_corners=True."""
    if out_size == 1:
        src = np.zeros((1,), np.float64)
    else:
        src = np.arange(out_size, dtype=np.float64) * (
            (in_size - 1) / (out_size - 1)
        )
    lo = np.clip(np.floor(src).astype(np.int64), 0, in_size - 1)
    hi = np.minimum(lo + 1, in_size - 1)
    frac = (src - lo).astype(np.float32)
    rows = np.arange(out_size)
    m = np.zeros((out_size, in_size), np.float32)
    m[rows, lo] += 1.0 - frac
    m[rows, hi] += frac
    return m


@functools.lru_cache(maxsize=None)
def _kron_interp_matrix(h: int, w: int, scale: int) -> np.ndarray:
    """Fused K^T = kron(Wh, Ww)^T with y_flat = x_flat @ K^T (host constant)."""
    wh = _interp_matrix_np(h, scale * h)            # (h_out, h)
    ww = _interp_matrix_np(w, scale * w)            # (w_out, w)
    kt = np.einsum("Hy,Wx->yxHW", wh, ww)           # (h, w, h_out, w_out)
    return kt.reshape(h * w, scale * scale * h * w).astype(np.float32)


@functools.lru_cache(maxsize=None)
def _vmem_capacity_bytes() -> int:
    try:
        return int(pltpu.get_tpu_info().vmem_capacity_bytes)
    except Exception:
        return 64 * 1024 * 1024  # conservative fallback: v7x per-TC VMEM


def _upsample_kernel(kt_ref, x_ref, o_ref):
    # kt_ref: (h*w, h_out*w_out) fused interpolation matrix (resident in VMEM)
    # x_ref : (TILE, h*w)        flattened input images
    # o_ref : (TILE, h_out*w_out)
    x = x_ref[...]
    if x.dtype != kt_ref.dtype:
        # Only taken for dtypes other than f32/bf16 (wrapper matches kt dtype).
        x = x.astype(kt_ref.dtype)
    y = jnp.dot(x, kt_ref[...], preferred_element_type=jnp.float32)
    o_ref[...] = y.astype(o_ref.dtype)


def _pick_tile(n_imgs: int, out_row_bytes: int) -> int:
    """Rows of flattened images per grid step."""
    vmem = _vmem_capacity_bytes()
    # Writeback dominates HBM traffic (output is scale^2 x the input), so the
    # tile is sized off the output-row width.  Bigger blocks on 128 MiB-VMEM
    # chips (v5e/v6e), smaller on 64 MiB v7x.
    out_cap = (16 << 20) if vmem >= (96 << 20) else (4 << 20)
    cap = max(8, (out_cap // max(out_row_bytes, 1)) // 8 * 8)

    if n_imgs <= cap:
        if n_imgs >= 512:
            # Give v7x megacore >= 2 "parallel" steps, but never push the
            # per-step matmul M below one full 256-row MXU tile.  On 1-TC
            # chips this costs at most one extra ~0.35us grid step.
            half = _round_up(pl.cdiv(n_imgs, 2), 8)
            return min(cap, max(half, 256))
        # Single step: full-M matmul, no MXU row padding, no ragged block.
        return n_imgs
    return cap


def set_upsample(x: jnp.ndarray, scale_factor: int) -> jnp.ndarray:
    """x: (b, n, c, h, w) -> (b, n, c, s*h, s*w), bilinear align_corners=True."""
    b, n, c, h, w = x.shape
    s = int(scale_factor)
    h_out, w_out = s * h, s * w
    hw, hw_out = h * w, h_out * w_out
    n_imgs = b * n * c

    # bf16 fast path: bf16 activations x bf16 weights -> f32 MXU accumulate.
    # f32 activations keep f32 weights (align_corners fractions like k*15/31
    # are not exactly representable in bf16).
    kt_dtype = jnp.bfloat16 if x.dtype == jnp.bfloat16 else jnp.float32
    kt = jnp.asarray(_kron_interp_matrix(h, w, s), dtype=kt_dtype)

    x_itemsize = jnp.dtype(x.dtype).itemsize
    kt_bytes = hw * hw_out * jnp.dtype(kt_dtype).itemsize

    tile = _pick_tile(n_imgs, hw_out * x_itemsize)
    grid = pl.cdiv(n_imgs, tile)

    # Free reshape (contiguous); no padding, no post-slice.
    x_flat = x.reshape(n_imgs, hw)

    # VMEM: double-buffered in/out blocks + ONE resident copy of K^T.
    block_bytes = 2 * tile * (hw + hw_out) * x_itemsize + kt_bytes
    vmem_cap = _vmem_capacity_bytes()
    vmem_limit = int(
        min(vmem_cap - (8 << 20), max(32 << 20, block_bytes + (8 << 20)))
    )

    cost = pl.CostEstimate(
        flops=2 * n_imgs * hw * hw_out,
        transcendentals=0,
        bytes_accessed=n_imgs * (hw + hw_out) * x_itemsize + kt_bytes,
    )

    # TODO(synk): for large spatial sizes where the dense kron K^T no longer
    # fits VMEM (h=w~48+ on v7x) or where the f32 matmul becomes MXU-bound on
    # v5e, switch to a separable two-pass kernel (X @ Ww^T, then Wh @ .).
    # TODO(synk): if hw or hw_out is not a multiple of 128, pad the flattened
    # spatial axes at build time so output stores stay lane-dense (vst, not
    # vst.msk); at the sizes used here they are already aligned.

    out_flat = pl.pallas_call(
        _upsample_kernel,
        out_shape=jax.ShapeDtypeStruct((n_imgs, hw_out), x.dtype),
        grid_spec=pltpu.PrefetchScalarGridSpec(
            num_scalar_prefetch=0,
            grid=(grid,),
            in_specs=[
                # K^T: whole array, single VMEM-resident copy (constant across
                # the grid -> never re-DMA'd, not double-buffered).
                pl.BlockSpec(memory_space=pltpu.MemorySpace.VMEM),
                # TILE flattened images, lane-dense (last dim = hw).
                pl.BlockSpec((tile, hw), lambda i: (i, 0)),
            ],
            # Lane-dense output stores (last dim = hw_out); ragged last block
            # (when tile does not divide n_imgs) is masked by Pallas.
            out_specs=pl.BlockSpec((tile, hw_out), lambda i: (i, 0)),
        ),
        compiler_params=pltpu.CompilerParams(
            dimension_semantics=("parallel",),
            vmem_limit_bytes=vmem_limit,
        ),
        cost_estimate=cost,
    )(kt, x_flat)

    return out_flat.reshape(b, n, c, h_out, w_out)


if __name__ == "__main__":
    key = jax.random.PRNGKey(0)
    b, n, c, h, w = 2, 3, 4, 16, 16
    scale = 2

    x = jax.random.normal(key, (b, n, c, h, w), dtype=jnp.float32)

    fn = jax.jit(set_upsample, static_argnums=1)
    out = jax.block_until_ready(fn(x, scale))

    # Pure-JAX separable reference (same semantics as F.upsample bilinear,
    # align_corners=True).
    wh = jnp.asarray(_interp_matrix_np(h, scale * h))
    ww = jnp.asarray(_interp_matrix_np(w, scale * w))
    ref = jnp.einsum(
        "Hh,bnchw,Ww->bncHW", wh, x.astype(jnp.float32), ww
    ).astype(x.dtype)

    assert out.shape == (b, n, c, scale * h, scale * w)
    assert jnp.allclose(out, ref, atol=1e-4, rtol=1e-4), float(
        jnp.max(jnp.abs(out - ref))
    )

    print("KERNEL_OK")
</pallas_src>

<mosaic_0001>
module attributes {stable_mosaic.version = 11 : i64} {
  func.func @_upsample_kernel(%arg0: i32, %arg1: memref<256x1024xf32, #tpu.memory_space<vmem>>, %arg2: memref<24x256xf32, #tpu.memory_space<vmem>>, %arg3: memref<24x1024xf32, #tpu.memory_space<vmem>>) attributes {dimension_semantics = [#tpu.dimension_semantics<parallel>], iteration_bounds = array<i64: 1>, scalar_prefetch = 0 : i64, scratch_operands = 0 : i64, tpu.core_type = #tpu.core_type<tc>, window_params = [{pipeline_mode = #tpu.pipeline_mode<synchronous>, transform_indices = @transform_0, window_bounds = array<i64: 256, 1024>}, {transform_indices = @transform_1, window_bounds = array<i64: 24, 256>}, {transform_indices = @transform_2, window_bounds = array<i64: 24, 1024>}]} {
    %c0 = arith.constant 0 : index
    %c0_0 = arith.constant 0 : index
    %0 = vector.load %arg2[%c0, %c0_0] : memref<24x256xf32, #tpu.memory_space<vmem>>, vector<24x256xf32>
    %c0_1 = arith.constant 0 : index
    %c0_2 = arith.constant 0 : index
    %1 = vector.load %arg1[%c0_1, %c0_2] : memref<256x1024xf32, #tpu.memory_space<vmem>>, vector<256x1024xf32>
    %cst = arith.constant dense<0.000000e+00> : vector<24x1024xf32>
    %2 = tpu.matmul %0, %1, %cst {dimension_numbers = #tpu.dot_dimension_numbers<[1], [0], [0], [1], [0, 0, 1, 1], [], []>} : vector<24x256xf32>, vector<256x1024xf32>, vector<24x1024xf32> -> vector<24x1024xf32>
    %c0_3 = arith.constant 0 : index
    %c0_4 = arith.constant 0 : index
    %3 = vector.load %arg3[%c0_3, %c0_4] : memref<24x1024xf32, #tpu.memory_space<vmem>>, vector<24x1024xf32>
    tpu.vector_store %arg3[%c0_3, %c0_4], %2 {strides = array<i32>} : memref<24x1024xf32, #tpu.memory_space<vmem>>, vector<24x1024xf32>,
    return
  }
  func.func @transform_0(%arg0: i32) -> (i32, i32) {
    %c0_i32 = arith.constant 0 : i32
    %c0_i32_0 = arith.constant 0 : i32
    %c0_i32_1 = arith.constant 0 : i32
    return %c0_i32, %c0_i32_0 : i32, i32
  }
  func.func @transform_1(%arg0: i32) -> (i32, i32) {
    %c0_i32 = arith.constant 0 : i32
    %c0_i32_0 = arith.constant 0 : i32
    return %arg0, %c0_i32 : i32, i32
  }
  func.func @transform_2(%arg0: i32) -> (i32, i32) {
    %c0_i32 = arith.constant 0 : i32
    %c0_i32_0 = arith.constant 0 : i32
    return %arg0, %c0_i32 : i32, i32
  }
}

</mosaic_0001>

<llo_original>
// kernel: set_upsample.1
$region0: #{set_upsample.1}
  #allocation0 [shape = 'u32[]', space=smem, size = 0x4, offset = 0x4, fixed_abs, tag = 'smem constant byte address 0x4 - core index']
  #allocation1 [shape = 'u32[144,128]{1,0:T(1,128)}', space=vmem, size = 0x12000, scoped, tag = 'internal scratch']
  %s0 = inlined_call_operand.hbm [shape: f32[256,1024], index: 0, kind: input, shape index: {}]
  %s1 = inlined_call_operand.vmem [shape: f32[24,256], index: 1, kind: input, shape index: {}]
  %s2 = inlined_call_operand.vmem [shape: f32[24,1024], index: 2, kind: output, shape index: {}]
  %s3 = sld [smem:[#allocation0]]
  $region22: #{set_upsample.1} parent=0
    _
  %s5 = ssub.s32 1, %s3
  %s6 = scalar_select 0, %s5, %s3
  $region1: #{set_upsample.1} parent=0
    #allocation2 [shape = 'u8[1048576]{0}', space=vmem, size = 0x100000, scoped, tag = 'input window, operand 0, single buffered']
    #allocation3 [shape = 's32[1]{0}', space=sflag, size = 0x4, scoped, tag = 'scoped memory for set_upsample.1']
    %7 = vsyncpa [#allocation3], 0
    // Predicated region
    $region2: #{set_upsample.1} parent=1 // pred_check
      _
    $region3: #{set_upsample.1} parent=1 // pred_check_branch
      %9 = sbr.rel (0) target = $region5
    $region4: #{set_upsample.1} parent=1 // pred_region
      %s11 = ssub.s32 32768, 32768
      %12 = vsyncadd [#allocation3], %s11
      %s13 = sshll.u32 [#allocation2], 4
      %s14 = int_to_ptr.vmem [resolvable:$true] %s13
      %19 = dma.hbm_to_vmem [thread:$0]  %s0, 32768, %s14, [#allocation3], 1024, 1024, 64
    $region5: #{set_upsample.1} parent=1 // pred_fallthru
      _
    // Predicated region
    $region6: #{set_upsample.1} parent=1 // pred_check
      _
    $region7: #{set_upsample.1} parent=1 // pred_check_branch
      %21 = sbr.rel (0) target = $region9
    $region8: #{set_upsample.1} parent=1 // pred_region
      _
    $region9: #{set_upsample.1} parent=1 // pred_fallthru
      _
    // Predicated region
    $region10: #{set_upsample.1} parent=1 // pred_check
      _
    $region11: #{set_upsample.1} parent=1 // pred_check_branch
      %23 = sbr.rel (0) target = $region13
    $region12: #{set_upsample.1} parent=1 // pred_region
      %24 = dma.done [#allocation3], 32768
    $region13: #{set_upsample.1} parent=1 // pred_fallthru
      _
    %v25 = vld [vmem:[%s1] sm:$0xff]
    %v26 = vld [vmem:[%s1 + $0x8] sm:$0xff]
    %v27 = vld [vmem:[%s1 + $0x10] sm:$0xff]
    %v28 = vld [vmem:[%s1 + $0x18] sm:$0xff]
    %v29 = vld [vmem:[%s1 + $0x20] sm:$0xff]
    %v30 = vld [vmem:[%s1 + $0x28] sm:$0xff]
    %v31 = vld [vmem:[#allocation2] sm:$0xff]
    %v32 = vld [vmem:[#allocation2 + $0x8] sm:$0xff]
    %v33 = vld [vmem:[#allocation2 + $0x10] sm:$0xff]
    %v34 = vld [vmem:[#allocation2 + $0x18] sm:$0xff]
    %v35 = vld [vmem:[#allocation2 + $0x20] sm:$0xff]
    %v36 = vld [vmem:[#allocation2 + $0x28] sm:$0xff]
    %v37 = vld [vmem:[#allocation2 + $0x30] sm:$0xff]
    %v38 = vld [vmem:[#allocation2 + $0x38] sm:$0xff]
    %v39 = vld [vmem:[#allocation2 + $0x40] sm:$0xff]
    %v40 = vld [vmem:[#allocation2 + $0x48] sm:$0xff]
    %v41 = vld [vmem:[#allocation2 + $0x50] sm:$0xff]
    %v42 = vld [vmem:[#allocation2 + $0x58] sm:$0xff]
    %v43 = vld [vmem:[#allocation2 + $0x60] sm:$0xff]
    %v44 = vld [vmem:[#allocation2 + $0x68] sm:$0xff]
    %v45 = vld [vmem:[#allocation2 + $0x70] sm:$0xff]
    %v46 = vld [vmem:[#allocation2 + $0x78] sm:$0xff]
    %v47 = vld [vmem:[#allocation2 + $0x80] sm:$0xff]
    %v48 = vld [vmem:[#allocation2 + $0x88] sm:$0xff]
    %v49 = vld [vmem:[#allocation2 + $0x90] sm:$0xff]
    %v50 = vld [vmem:[#allocation2 + $0x98] sm:$0xff]
    %v51 = vld [vmem:[#allocation2 + $0xa0] sm:$0xff]
    %v52 = vld [vmem:[#allocation2 + $0xa8] sm:$0xff]
    %v53 = vld [vmem:[#allocation2 + $0xb0] sm:$0xff]
    %v54 = vld [vmem:[#allocation2 + $0xb8] sm:$0xff]
    %v55 = vld [vmem:[#allocation2 + $0xc0] sm:$0xff]
    %v56 = vld [vmem:[#allocation2 + $0xc8] sm:$0xff]
    %v57 = vld [vmem:[#allocation2 + $0xd0] sm:$0xff]
    %v58 = vld [vmem:[#allocation2 + $0xd8] sm:$0xff]
    %v59 = vld [vmem:[#allocation2 + $0xe0] sm:$0xff]
    %v60 = vld [vmem:[#allocation2 + $0xe8] sm:$0xff]
    %v61 = vld [vmem:[#allocation2 + $0xf0] sm:$0xff]
    %v62 = vld [vmem:[#allocation2 + $0xf8] sm:$0xff]
    %v63 = vld [vmem:[#allocation2 + $0x100] sm:$0xff]
    %v64 = vld [vmem:[#allocation2 + $0x108] sm:$0xff]
    %v65 = vld [vmem:[#allocation2 + $0x110] sm:$0xff]
    %v66 = vld [vmem:[#allocation2 + $0x118] sm:$0xff]
    %v67 = vld [vmem:[#allocation2 + $0x120] sm:$0xff]
    %v68 = vld [vmem:[#allocation2 + $0x128] sm:$0xff]
    %v69 = vld [vmem:[#allocation2 + $0x130] sm:$0xff]
    %v70 = vld [vmem:[#allocation2 + $0x138] sm:$0xff]
    %v71 = vld [vmem:[#allocation2 + $0x140] sm:$0xff]
    %v72 = vld [vmem:[#allocation2 + $0x148] sm:$0xff]
    %v73 = vld [vmem:[#allocation2 + $0x150] sm:$0xff]
    %v74 = vld [vmem:[#allocation2 + $0x158] sm:$0xff]
    %v75 = vld [vmem:[#allocation2 + $0x160] sm:$0xff]
    %v76 = vld [vmem:[#allocation2 + $0x168] sm:$0xff]
    %v77 = vld [vmem:[#allocation2 + $0x170] sm:$0xff]
    %v78 = vld [vmem:[#allocation2 + $0x178] sm:$0xff]
    %v79 = vld [vmem:[#allocation2 + $0x180] sm:$0xff]
    %v80 = vld [vmem:[#allocation2 + $0x188] sm:$0xff]
    %v81 = vld [vmem:[#allocation2 + $0x190] sm:$0xff]
    %v82 = vld [vmem:[#allocation2 + $0x198] sm:$0xff]
    %v83 = vld [vmem:[#allocation2 + $0x1a0] sm:$0xff]
    %v84 = vld [vmem:[#allocation2 + $0x1a8] sm:$0xff]
    %v85 = vld [vmem:[#allocation2 + $0x1b0] sm:$0xff]
    %v86 = vld [vmem:[#allocation2 + $0x1b8] sm:$0xff]
    %v87 = vld [vmem:[#allocation2 + $0x1c0] sm:$0xff]
    %v88 = vld [vmem:[#allocation2 + $0x1c8] sm:$0xff]
    %v89 = vld [vmem:[#allocation2 + $0x1d0] sm:$0xff]
    %v90 = vld [vmem:[#allocation2 + $0x1d8] sm:$0xff]
    %v91 = vld [vmem:[#allocation2 + $0x1e0] sm:$0xff]
    %v92 = vld [vmem:[#allocation2 + $0x1e8] sm:$0xff]
    %v93 = vld [vmem:[#allocation2 + $0x1f0] sm:$0xff]
    %v94 = vld [vmem:[#allocation2 + $0x1f8] sm:$0xff]
    %v95 = vld [vmem:[#allocation2 + $0x200] sm:$0xff]
    %v96 = vld [vmem:[#allocation2 + $0x208] sm:$0xff]
    %v97 = vld [vmem:[#allocation2 + $0x210] sm:$0xff]
    %v98 = vld [vmem:[#allocation2 + $0x218] sm:$0xff]
    %v99 = vld [vmem:[#allocation2 + $0x220] sm:$0xff]
    %v100 = vld [vmem:[#allocation2 + $0x228] sm:$0xff]
    %v101 = vld [vmem:[#allocation2 + $0x230] sm:$0xff]
    %v102 = vld [vmem:[#allocation2 + $0x238] sm:$0xff]
    %v103 = vld [vmem:[#allocation2 + $0x240] sm:$0xff]
    %v104 = vld [vmem:[#allocation2 + $0x248] sm:$0xff]
    %v105 = vld [vmem:[#allocation2 + $0x250] sm:$0xff]
    %v106 = vld [vmem:[#allocation2 + $0x258] sm:$0xff]
    %v107 = vld [vmem:[#allocation2 + $0x260] sm:$0xff]
    %v108 = vld [vmem:[#allocation2 + $0x268] sm:$0xff]
    %v109 = vld [vmem:[#allocation2 + $0x270] sm:$0xff]
    %v110 = vld [vmem:[#allocation2 + $0x278] sm:$0xff]
    %v111 = vld [vmem:[#allocation2 + $0x280] sm:$0xff]
    %v112 = vld [vmem:[#allocation2 + $0x288] sm:$0xff]
    %v113 = vld [vmem:[#allocation2 + $0x290] sm:$0xff]
    %v114 = vld [vmem:[#allocation2 + $0x298] sm:$0xff]
    %v115 = vld [vmem:[#allocation2 + $0x2a0] sm:$0xff]
    %v116 = vld [vmem:[#allocation2 + $0x2a8] sm:$0xff]
    %v117 = vld [vmem:[#allocation2 + $0x2b0] sm:$0xff]
    %v118 = vld [vmem:[#allocation2 + $0x2b8] sm:$0xff]
    %v119 = vld [vmem:[#allocation2 + $0x2c0] sm:$0xff]
    %v120 = vld [vmem:[#allocation2 + $0x2c8] sm:$0xff]
    %v121 = vld [vmem:[#allocation2 + $0x2d0] sm:$0xff]
    %v122 = vld [vmem:[#allocation2 + $0x2d8] sm:$0xff]
    %v123 = vld [vmem:[#allocation2 + $0x2e0] sm:$0xff]
    %v124 = vld [vmem:[#allocation2 + $0x2e8] sm:$0xff]
    %v125 = vld [vmem:[#allocation2 + $0x2f0] sm:$0xff]
    %v126 = vld [vmem:[#allocation2 + $0x2f8] sm:$0xff]
    %v127 = vld [vmem:[#allocation2 + $0x300] sm:$0xff]
    %v128 = vld [vmem:[#allocation2 + $0x308] sm:$0xff]
    %v129 = vld [vmem:[#allocation2 + $0x310] sm:$0xff]
    %v130 = vld [vmem:[#allocation2 + $0x318] sm:$0xff]
    %v131 = vld [vmem:[#allocation2 + $0x320] sm:$0xff]
    %v132 = vld [vmem:[#allocation2 + $0x328] sm:$0xff]
    %v133 = vld [vmem:[#allocation2 + $0x330] sm:$0xff]
    %v134 = vld [vmem:[#allocation2 + $0x338] sm:$0xff]
    %v135 = vld [vmem:[#allocation2 + $0x340] sm:$0xff]
    %v136 = vld [vmem:[#allocation2 + $0x348] sm:$0xff]
    %v137 = vld [vmem:[#allocation2 + $0x350] sm:$0xff]
    %v138 = vld [vmem:[#allocation2 + $0x358] sm:$0xff]
    %v139 = vld [vmem:[#allocation2 + $0x360] sm:$0xff]
    %v140 = vld [vmem:[#allocation2 + $0x368] sm:$0xff]
    %v141 = vld [vmem:[#allocation2 + $0x370] sm:$0xff]
    %v142 = vld [vmem:[#allocation2 + $0x378] sm:$0xff]
    %v143 = vld [vmem:[#allocation2 + $0x380] sm:$0xff]
    %v144 = vld [vmem:[#allocation2 + $0x388] sm:$0xff]
    %v145 = vld [vmem:[#allocation2 + $0x390] sm:$0xff]
    %v146 = vld [vmem:[#allocation2 + $0x398] sm:$0xff]
    %v147 = vld [vmem:[#allocation2 + $0x3a0] sm:$0xff]
    %v148 = vld [vmem:[#allocation2 + $0x3a8] sm:$0xff]
    %v149 = vld [vmem:[#allocation2 + $0x3b0] sm:$0xff]
    %v150 = vld [vmem:[#allocation2 + $0x3b8] sm:$0xff]
    %v151 = vld [vmem:[#allocation2 + $0x3c0] sm:$0xff]
    %v152 = vld [vmem:[#allocation2 + $0x3c8] sm:$0xff]
    %v153 = vld [vmem:[#allocation2 + $0x3d0] sm:$0xff]
    %v154 = vld [vmem:[#allocation2 + $0x3d8] sm:$0xff]
    %v155 = vld [vmem:[#allocation2 + $0x3e0] sm:$0xff]
    %v156 = vld [vmem:[#allocation2 + $0x3e8] sm:$0xff]
    %v157 = vld [vmem:[#allocation2 + $0x3f0] sm:$0xff]
    %v158 = vld [vmem:[#allocation2 + $0x3f8] sm:$0xff]
    %v159 = vld [vmem:[#allocation2 + $0x400] sm:$0xff]
    %v160 = vld [vmem:[#allocation2 + $0x408] sm:$0xff]
    %v161 = vld [vmem:[#allocation2 + $0x410] sm:$0xff]
    %v162 = vld [vmem:[#allocation2 + $0x418] sm:$0xff]
    %v163 = vld [vmem:[#allocation2 + $0x420] sm:$0xff]
    %v164 = vld [vmem:[#allocation2 + $0x428] sm:$0xff]
    %v165 = vld [vmem:[#allocation2 + $0x430] sm:$0xff]
    %v166 = vld [vmem:[#allocation2 + $0x438] sm:$0xff]
    %v167 = vld [vmem:[#allocation2 + $0x440] sm:$0xff]
    %v168 = vld [vmem:[#allocation2 + $0x448] sm:$0xff]
    %v169 = vld [vmem:[#allocation2 + $0x450] sm:$0xff]
    %v170 = vld [vmem:[#allocation2 + $0x458] sm:$0xff]
    %v171 = vld [vmem:[#allocation2 + $0x460] sm:$0xff]
    %v172 = vld [vmem:[#allocation2 + $0x468] sm:$0xff]
    %v173 = vld [vmem:[#allocation2 + $0x470] sm:$0xff]
    %v174 = vld [vmem:[#allocation2 + $0x478] sm:$0xff]
    %v175 = vld [vmem:[#allocation2 + $0x480] sm:$0xff]
    %v176 = vld [vmem:[#allocation2 + $0x488] sm:$0xff]
    %v177 = vld [vmem:[#allocation2 + $0x490] sm:$0xff]
    %v178 = vld [vmem:[#allocation2 + $0x498] sm:$0xff]
    %v179 = vld [vmem:[#allocation2 + $0x4a0] sm:$0xff]
    %v180 = vld [vmem:[#allocation2 + $0x4a8] sm:$0xff]
    %v181 = vld [vmem:[#allocation2 + $0x4b0] sm:$0xff]
    %v182 = vld [vmem:[#allocation2 + $0x4b8] sm:$0xff]
    %v183 = vld [vmem:[#allocation2 + $0x4c0] sm:$0xff]
    %v184 = vld [vmem:[#allocation2 + $0x4c8] sm:$0xff]
    %v185 = vld [vmem:[#allocation2 + $0x4d0] sm:$0xff]
    %v186 = vld [vmem:[#allocation2 + $0x4d8] sm:$0xff]
    %v187 = vld [vmem:[#allocation2 + $0x4e0] sm:$0xff]
    %v188 = vld [vmem:[#allocation2 + $0x4e8] sm:$0xff]
    %v189 = vld [vmem:[#allocation2 + $0x4f0] sm:$0xff]
    %v190 = vld [vmem:[#allocation2 + $0x4f8] sm:$0xff]
    %v191 = vld [vmem:[#allocation2 + $0x500] sm:$0xff]
    %v192 = vld [vmem:[#allocation2 + $0x508] sm:$0xff]
    %v193 = vld [vmem:[#allocation2 + $0x510] sm:$0xff]
    %v194 = vld [vmem:[#allocation2 + $0x518] sm:$0xff]
    %v195 = vld [vmem:[#allocation2 + $0x520] sm:$0xff]
    %v196 = vld [vmem:[#allocation2 + $0x528] sm:$0xff]
    %v197 = vld [vmem:[#allocation2 + $0x530] sm:$0xff]
    %v198 = vld [vmem:[#allocation2 + $0x538] sm:$0xff]
    %v199 = vld [vmem:[#allocation2 + $0x540] sm:$0xff]
    %v200 = vld [vmem:[#allocation2 + $0x548] sm:$0xff]
    %v201 = vld [vmem:[#allocation2 + $0x550] sm:$0xff]
    %v202 = vld [vmem:[#allocation2 + $0x558] sm:$0xff]
    %v203 = vld [vmem:[#allocation2 + $0x560] sm:$0xff]
    %v204 = vld [vmem:[#allocation2 + $0x568] sm:$0xff]
    %v205 = vld [vmem:[#allocation2 + $0x570] sm:$0xff]
    %v206 = vld [vmem:[#allocation2 + $0x578] sm:$0xff]
    %v207 = vld [vmem:[#allocation2 + $0x580] sm:$0xff]
    %v208 = vld [vmem:[#allocation2 + $0x588] sm:$0xff]
    %v209 = vld [vmem:[#allocation2 + $0x590] sm:$0xff]
    %v210 = vld [vmem:[#allocation2 + $0x598] sm:$0xff]
    %v211 = vld [vmem:[#allocation2 + $0x5a0] sm:$0xff]
    %v212 = vld [vmem:[#allocation2 + $0x5a8] sm:$0xff]
    %v213 = vld [vmem:[#allocation2 + $0x5b0] sm:$0xff]
    %v214 = vld [vmem:[#allocation2 + $0x5b8] sm:$0xff]
    %v215 = vld [vmem:[#allocation2 + $0x5c0] sm:$0xff]
    %v216 = vld [vmem:[#allocation2 + $0x5c8] sm:$0xff]
    %v217 = vld [vmem:[#allocation2 + $0x5d0] sm:$0xff]
    %v218 = vld [vmem:[#allocation2 + $0x5d8] sm:$0xff]
    %v219 = vld [vmem:[#allocation2 + $0x5e0] sm:$0xff]
    %v220 = vld [vmem:[#allocation2 + $0x5e8] sm:$0xff]
    %v221 = vld [vmem:[#allocation2 + $0x5f0] sm:$0xff]
    %v222 = vld [vmem:[#allocation2 + $0x5f8] sm:$0xff]
    %v223 = vld [vmem:[#allocation2 + $0x600] sm:$0xff]
    %v224 = vld [vmem:[#allocation2 + $0x608] sm:$0xff]
    %v225 = vld [vmem:[#allocation2 + $0x610] sm:$0xff]
    %v226 = vld [vmem:[#allocation2 + $0x618] sm:$0xff]
    %v227 = vld [vmem:[#allocation2 + $0x620] sm:$0xff]
    %v228 = vld [vmem:[#allocation2 + $0x628] sm:$0xff]
    %v229 = vld [vmem:[#allocation2 + $0x630] sm:$0xff]
    %v230 = vld [vmem:[#allocation2 + $0x638] sm:$0xff]
    %v231 = vld [vmem:[#allocation2 + $0x640] sm:$0xff]
    %v232 = vld [vmem:[#allocation2 + $0x648] sm:$0xff]
    %v233 = vld [vmem:[#allocation2 + $0x650] sm:$0xff]
    %v234 = vld [vmem:[#allocation2 + $0x658] sm:$0xff]
    %v235 = vld [vmem:[#allocation2 + $0x660] sm:$0xff]
    %v236 = vld [vmem:[#allocation2 + $0x668] sm:$0xff]
    %v237 = vld [vmem:[#allocation2 + $0x670] sm:$0xff]
    %v238 = vld [vmem:[#allocation2 + $0x678] sm:$0xff]
    %v239 = vld [vmem:[#allocation2 + $0x680] sm:$0xff]
    %v240 = vld [vmem:[#allocation2 + $0x688] sm:$0xff]
    %v241 = vld [vmem:[#allocation2 + $0x690] sm:$0xff]
    %v242 = vld [vmem:[#allocation2 + $0x698] sm:$0xff]
    %v243 = vld [vmem:[#allocation2 + $0x6a0] sm:$0xff]
    %v244 = vld [vmem:[#allocation2 + $0x6a8] sm:$0xff]
    %v245 = vld [vmem:[#allocation2 + $0x6b0] sm:$0xff]
    %v246 = vld [vmem:[#allocation2 + $0x6b8] sm:$0xff]
    %v247 = vld [vmem:[#allocation2 + $0x6c0] sm:$0xff]
    %v248 = vld [vmem:[#allocation2 + $0x6c8] sm:$0xff]
    %v249 = vld [vmem:[#allocation2 + $0x6d0] sm:$0xff]
    %v250 = vld [vmem:[#allocation2 + $0x6d8] sm:$0xff]
    %v251 = vld [vmem:[#allocation2 + $0x6e0] sm:$0xff]
    %v252 = vld [vmem:[#allocation2 + $0x6e8] sm:$0xff]
    %v253 = vld [vmem:[#allocation2 + $0x6f0] sm:$0xff]
    %v254 = vld [vmem:[#allocation2 + $0x6f8] sm:$0xff]
    %v255 = vld [vmem:[#allocation2 + $0x700] sm:$0xff]
    %v256 = vld [vmem:[#allocation2 + $0x708] sm:$0xff]
    %v257 = vld [vmem:[#allocation2 + $0x710] sm:$0xff]
    %v258 = vld [vmem:[#allocation2 + $0x718] sm:$0xff]
    %v259 = vld [vmem:[#allocation2 + $0x720] sm:$0xff]
    %v260 = vld [vmem:[#allocation2 + $0x728] sm:$0xff]
    %v261 = vld [vmem:[#allocation2 + $0x730] sm:$0xff]
    %v262 = vld [vmem:[#allocation2 + $0x738] sm:$0xff]
    %v263 = vld [vmem:[#allocation2 + $0x740] sm:$0xff]
    %v264 = vld [vmem:[#allocation2 + $0x748] sm:$0xff]
    %v265 = vld [vmem:[#allocation2 + $0x750] sm:$0xff]
    %v266 = vld [vmem:[#allocation2 + $0x758] sm:$0xff]
    %v267 = vld [vmem:[#allocation2 + $0x760] sm:$0xff]
    %v268 = vld [vmem:[#allocation2 + $0x768] sm:$0xff]
    %v269 = vld [vmem:[#allocation2 + $0x770] sm:$0xff]
    %v270 = vld [vmem:[#allocation2 + $0x778] sm:$0xff]
    %v271 = vld [vmem:[#allocation2 + $0x780] sm:$0xff]
    %v272 = vld [vmem:[#allocation2 + $0x788] sm:$0xff]
    %v273 = vld [vmem:[#allocation2 + $0x790] sm:$0xff]
    %v274 = vld [vmem:[#allocation2 + $0x798] sm:$0xff]
    %v275 = vld [vmem:[#allocation2 + $0x7a0] sm:$0xff]
    %v276 = vld [vmem:[#allocation2 + $0x7a8] sm:$0xff]
    %v277 = vld [vmem:[#allocation2 + $0x7b0] sm:$0xff]
    %v278 = vld [vmem:[#allocation2 + $0x7b8] sm:$0xff]
    %v279 = vld [vmem:[#allocation2 + $0x7c0] sm:$0xff]
    %v280 = vld [vmem:[#allocation2 + $0x7c8] sm:$0xff]
    %v281 = vld [vmem:[#allocation2 + $0x7d0] sm:$0xff]
    %v282 = vld [vmem:[#allocation2 + $0x7d8] sm:$0xff]
    %v283 = vld [vmem:[#allocation2 + $0x7e0] sm:$0xff]
    %v284 = vld [vmem:[#allocation2 + $0x7e8] sm:$0xff]
    %v285 = vld [vmem:[#allocation2 + $0x7f0] sm:$0xff]
    %v286 = vld [vmem:[#allocation2 + $0x7f8] sm:$0xff]
    %287 = vmatprep.subr.mxu0 %v152
    %288 = vmatpush1.msra.mxu0 %v151
    %289 = vmatprep.subr.mxu0 %v144
    %290 = vmatpush1.msra.mxu0 %v143
    %291 = vmatprep.subr.mxu0 %v136
    %292 = vmatpush1.msra.mxu0 %v135
    %293 = vmatprep.subr.mxu0 %v128
    %294 = vmatpush1.msra.mxu0 %v127
    %295 = vmatprep.subr.mxu0 %v120
    %296 = vmatpush1.msra.mxu0 %v119
    %297 = vmatprep.subr.mxu0 %v112
    %298 = vmatpush1.msra.mxu0 %v111
    %299 = vmatprep.subr.mxu0 %v104
    %300 = vmatpush1.msra.mxu0 %v103
    %301 = vmatprep.subr.mxu0 %v96
    %302 = vmatpush1.msra.mxu0 %v95
    %303 = vmatprep.subr.mxu0 %v88
    %304 = vmatpush1.msra.mxu0 %v87
    %305 = vmatprep.subr.mxu0 %v80
    %306 = vmatpush1.msra.mxu0 %v79
    %307 = vmatprep.subr.mxu0 %v72
    %308 = vmatpush1.msra.mxu0 %v71
    %309 = vmatprep.subr.mxu0 %v64
    %310 = vmatpush1.msra.mxu0 %v63
    %311 = vmatprep.subr.mxu0 %v56
    %312 = vmatpush1.msra.mxu0 %v55
    %313 = vmatprep.subr.mxu0 %v48
    %314 = vmatpush1.msra.mxu0 %v47
    %315 = vmatprep.subr.mxu0 %v40
    %316 = vmatpush1.msra.mxu0 %v39
    %317 = vmatprep.subr.mxu0 %v32
    %318 = vmatpush1.msra.mxu0 %v31
    %319 = vmatprep.subr.mxu0 %v280
    %320 = vmatpush2.msra.mxu0 %v279
    %321 = vmatprep.subr.mxu0 %v272
    %322 = vmatpush2.msra.mxu0 %v271
    %323 = vmatprep.subr.mxu0 %v264
    %324 = vmatpush2.msra.mxu0 %v263
    %325 = vmatprep.subr.mxu0 %v256
    %326 = vmatpush2.msra.mxu0 %v255
    %327 = vmatprep.subr.mxu0 %v248
    %328 = vmatpush2.msra.mxu0 %v247
    %329 = vmatprep.subr.mxu0 %v240
    %330 = vmatpush2.msra.mxu0 %v239
    %331 = vmatprep.subr.mxu0 %v232
    %332 = vmatpush2.msra.mxu0 %v231
    %333 = vmatprep.subr.mxu0 %v224
    %334 = vmatpush2.msra.mxu0 %v223
    %335 = vmatprep.subr.mxu0 %v216
    %336 = vmatpush2.msra.mxu0 %v215
    %337 = vmatprep.subr.mxu0 %v208
    %338 = vmatpush2.msra.mxu0 %v207
    %339 = vmatprep.subr.mxu0 %v200
    %340 = vmatpush2.msra.mxu0 %v199
    %341 = vmatprep.subr.mxu0 %v192
    %342 = vmatpush2.msra.mxu0 %v191
    %343 = vmatprep.subr.mxu0 %v184
    %344 = vmatpush2.msra.mxu0 %v183
    %345 = vmatprep.subr.mxu0 %v176
    %346 = vmatpush2.msra.mxu0 %v175
    %347 = vmatprep.subr.mxu0 %v168
    %348 = vmatpush2.msra.mxu0 %v167
    %349 = vmatprep.subr.mxu0 %v160
    %350 = vmatpush2.msra.mxu0 %v159
    %351 = vmatprep.mubr.f32.mxu0 %v26
    %352 = vmatmul.mubr.f32.gmra.mxu0 %v25
    %v353 = vpop.f32.mrf.mxu0
    %v354 = vadd.f32 0.0, %v353
    %v355 = vpop.f32.mrf.mxu0
    %v356 = vadd.f32 0.0, %v355
    %357 = vmatprep.mubr.f32.mxu0 %v28
    %358 = vmatmul.mubr.f32.gmra.mxu0 %v27
    %v359 = vpop.f32.mrf.mxu0
    %v360 = vadd.f32 0.0, %v359
    %v361 = vpop.f32.mrf.mxu0
    %v362 = vadd.f32 0.0, %v361
    %363 = vmatprep.mubr.f32.mxu0 %v30
    %364 = vmatmul.mubr.f32.gmra.mxu0 %v29
    %v365 = vpop.f32.mrf.mxu0
    %v366 = vadd.f32 0.0, %v365
    %v367 = vpop.f32.mrf.mxu0
    %v368 = vadd.f32 0.0, %v367
    %369 = vdwg.mxu0
    %370 = vmatprep.subr.mxu0 %v154
    %371 = vmatpush1.msra.mxu0 %v153
    %372 = vmatprep.subr.mxu0 %v146
    %373 = vmatpush1.msra.mxu0 %v145
    %374 = vmatprep.subr.mxu0 %v138
    %375 = vmatpush1.msra.mxu0 %v137
    %376 = vmatprep.subr.mxu0 %v130
    %377 = vmatpush1.msra.mxu0 %v129
    %378 = vmatprep.subr.mxu0 %v122
    %379 = vmatpush1.msra.mxu0 %v121
    %380 = vmatprep.subr.mxu0 %v114
    %381 = vmatpush1.msra.mxu0 %v113
    %382 = vmatprep.subr.mxu0 %v106
    %383 = vmatpush1.msra.mxu0 %v105
    %384 = vmatprep.subr.mxu0 %v98
    %385 = vmatpush1.msra.mxu0 %v97
    %386 = vmatprep.subr.mxu0 %v90
    %387 = vmatpush1.msra.mxu0 %v89
    %388 = vmatprep.subr.mxu0 %v82
    %389 = vmatpush1.msra.mxu0 %v81
    %390 = vmatprep.subr.mxu0 %v74
    %391 = vmatpush1.msra.mxu0 %v73
    %392 = vmatprep.subr.mxu0 %v66
    %393 = vmatpush1.msra.mxu0 %v65
    %394 = vmatprep.subr.mxu0 %v58
    %395 = vmatpush1.msra.mxu0 %v57
    %396 = vmatprep.subr.mxu0 %v50
    %397 = vmatpush1.msra.mxu0 %v49
    %398 = vmatprep.subr.mxu0 %v42
    %399 = vmatpush1.msra.mxu0 %v41
    %400 = vmatprep.subr.mxu0 %v34
    %401 = vmatpush1.msra.mxu0 %v33
    %402 = vmatprep.subr.mxu0 %v282
    %403 = vmatpush2.msra.mxu0 %v281
    %404 = vmatprep.subr.mxu0 %v274
    %405 = vmatpush2.msra.mxu0 %v273
    %406 = vmatprep.subr.mxu0 %v266
    %407 = vmatpush2.msra.mxu0 %v265
    %408 = vmatprep.subr.mxu0 %v258
    %409 = vmatpush2.msra.mxu0 %v257
    %410 = vmatprep.subr.mxu0 %v250
    %411 = vmatpush2.msra.mxu0 %v249
    %412 = vmatprep.subr.mxu0 %v242
    %413 = vmatpush2.msra.mxu0 %v241
    %414 = vmatprep.subr.mxu0 %v234
    %415 = vmatpush2.msra.mxu0 %v233
    %416 = vmatprep.subr.mxu0 %v226
    %417 = vmatpush2.msra.mxu0 %v225
    %418 = vmatprep.subr.mxu0 %v218
    %419 = vmatpush2.msra.mxu0 %v217
    %420 = vmatprep.subr.mxu0 %v210
    %421 = vmatpush2.msra.mxu0 %v209
    %422 = vmatprep.subr.mxu0 %v202
    %423 = vmatpush2.msra.mxu0 %v201
    %424 = vmatprep.subr.mxu0 %v194
    %425 = vmatpush2.msra.mxu0 %v193
    %426 = vmatprep.subr.mxu0 %v186
    %427 = vmatpush2.msra.mxu0 %v185
    %428 = vmatprep.subr.mxu0 %v178
    %429 = vmatpush2.msra.mxu0 %v177
    %430 = vmatprep.subr.mxu0 %v170
    %431 = vmatpush2.msra.mxu0 %v169
    %432 = vmatprep.subr.mxu0 %v162
    %433 = vmatpush2.msra.mxu0 %v161
    %434 = vmatprep.mubr.f32.mxu0 %v26
    %435 = vmatmul.mubr.f32.gmra.mxu0 %v25
    %v436 = vpop.f32.mrf.mxu0
    %v437 = vadd.f32 0.0, %v436
    %v438 = vpop.f32.mrf.mxu0
    %v439 = vadd.f32 0.0, %v438
    %440 = vmatprep.mubr.f32.mxu0 %v28
    %441 = vmatmul.mubr.f32.gmra.mxu0 %v27
    %v442 = vpop.f32.mrf.mxu0
    %v443 = vadd.f32 0.0, %v442
    %v444 = vpop.f32.mrf.mxu0
    %v445 = vadd.f32 0.0, %v444
    %446 = vmatprep.mubr.f32.mxu0 %v30
    %447 = vmatmul.mubr.f32.gmra.mxu0 %v29
    %v448 = vpop.f32.mrf.mxu0
    %v449 = vadd.f32 0.0, %v448
    %v450 = vpop.f32.mrf.mxu0
    %v451 = vadd.f32 0.0, %v450
    %452 = vdwg.mxu0
    %453 = vmatprep.subr.mxu0 %v156
    %454 = vmatpush1.msra.mxu0 %v155
    %455 = vmatprep.subr.mxu0 %v148
    %456 = vmatpush1.msra.mxu0 %v147
    %457 = vmatprep.subr.mxu0 %v140
    %458 = vmatpush1.msra.mxu0 %v139
    %459 = vmatprep.subr.mxu0 %v132
    %460 = vmatpush1.msra.mxu0 %v131
    %461 = vmatprep.subr.mxu0 %v124
    %462 = vmatpush1.msra.mxu0 %v123
    %463 = vmatprep.subr.mxu0 %v116
    %464 = vmatpush1.msra.mxu0 %v115
    %465 = vmatprep.subr.mxu0 %v108
    %466 = vmatpush1.msra.mxu0 %v107
    %467 = vmatprep.subr.mxu0 %v100
    %468 = vmatpush1.msra.mxu0 %v99
    %469 = vmatprep.subr.mxu0 %v92
    %470 = vmatpush1.msra.mxu0 %v91
    %471 = vmatprep.subr.mxu0 %v84
    %472 = vmatpush1.msra.mxu0 %v83
    %473 = vmatprep.subr.mxu0 %v76
    %474 = vmatpush1.msra.mxu0 %v75
    %475 = vmatprep.subr.mxu0 %v68
    %476 = vmatpush1.msra.mxu0 %v67
    %477 = vmatprep.subr.mxu0 %v60
    %478 = vmatpush1.msra.mxu0 %v59
    %479 = vmatprep.subr.mxu0 %v52
    %480 = vmatpush1.msra.mxu0 %v51
    %481 = vmatprep.subr.mxu0 %v44
    %482 = vmatpush1.msra.mxu0 %v43
    %483 = vmatprep.subr.mxu0 %v36
    %484 = vmatpush1.msra.mxu0 %v35
    %485 = vmatprep.subr.mxu0 %v284
    %486 = vmatpush2.msra.mxu0 %v283
    %487 = vmatprep.subr.mxu0 %v276
    %488 = vmatpush2.msra.mxu0 %v275
    %489 = vmatprep.subr.mxu0 %v268
    %490 = vmatpush2.msra.mxu0 %v267
    %491 = vmatprep.subr.mxu0 %v260
    %492 = vmatpush2.msra.mxu0 %v259
    %493 = vmatprep.subr.mxu0 %v252
    %494 = vmatpush2.msra.mxu0 %v251
    %495 = vmatprep.subr.mxu0 %v244
    %496 = vmatpush2.msra.mxu0 %v243
    %497 = vmatprep.subr.mxu0 %v236
    %498 = vmatpush2.msra.mxu0 %v235
    %499 = vmatprep.subr.mxu0 %v228
    %500 = vmatpush2.msra.mxu0 %v227
    %501 = vmatprep.subr.mxu0 %v220
    %502 = vmatpush2.msra.mxu0 %v219
    %503 = vmatprep.subr.mxu0 %v212
    %504 = vmatpush2.msra.mxu0 %v211
    %505 = vmatprep.subr.mxu0 %v204
    %506 = vmatpush2.msra.mxu0 %v203
    %507 = vmatprep.subr.mxu0 %v196
    %508 = vmatpush2.msra.mxu0 %v195
    %509 = vmatprep.subr.mxu0 %v188
    %510 = vmatpush2.msra.mxu0 %v187
    %511 = vmatprep.subr.mxu0 %v180
    %512 = vmatpush2.msra.mxu0 %v179
    %513 = vmatprep.subr.mxu0 %v172
    %514 = vmatpush2.msra.mxu0 %v171
    %515 = vmatprep.subr.mxu0 %v164
    %516 = vmatpush2.msra.mxu0 %v163
    %517 = vmatprep.mubr.f32.mxu0 %v26
    %518 = vmatmul.mubr.f32.gmra.mxu0 %v25
    %v519 = vpop.f32.mrf.mxu0
    %v520 = vadd.f32 0.0, %v519
    %v521 = vpop.f32.mrf.mxu0
    %v522 = vadd.f32 0.0, %v521
    %523 = vmatprep.mubr.f32.mxu0 %v28
    %524 = vmatmul.mubr.f32.gmra.mxu0 %v27
    %v525 = vpop.f32.mrf.mxu0
    %v526 = vadd.f32 0.0, %v525
    %v527 = vpop.f32.mrf.mxu0
    %v528 = vadd.f32 0.0, %v527
    %529 = vmatprep.mubr.f32.mxu0 %v30
    %530 = vmatmul.mubr.f32.gmra.mxu0 %v29
    %v531 = vpop.f32.mrf.mxu0
    %v532 = vadd.f32 0.0, %v531
    %v533 = vpop.f32.mrf.mxu0
    %v534 = vadd.f32 0.0, %v533
    %535 = vdwg.mxu0
    %536 = vmatprep.subr.mxu0 %v158
    %537 = vmatpush1.msra.mxu0 %v157
    %538 = vmatprep.subr.mxu0 %v150
    %539 = vmatpush1.msra.mxu0 %v149
    %540 = vmatprep.subr.mxu0 %v142
    %541 = vmatpush1.msra.mxu0 %v141
    %542 = vmatprep.subr.mxu0 %v134
    %543 = vmatpush1.msra.mxu0 %v133
    %544 = vmatprep.subr.mxu0 %v126
    %545 = vmatpush1.msra.mxu0 %v125
    %546 = vmatprep.subr.mxu0 %v118
    %547 = vmatpush1.msra.mxu0 %v117
    %548 = vmatprep.subr.mxu0 %v110
    %549 = vmatpush1.msra.mxu0 %v109
    %550 = vmatprep.subr.mxu0 %v102
    %551 = vmatpush1.msra.mxu0 %v101
    %552 = vmatprep.subr.mxu0 %v94
    %553 = vmatpush1.msra.mxu0 %v93
    %554 = vmatprep.subr.mxu0 %v86
    %555 = vmatpush1.msra.mxu0 %v85
    %556 = vmatprep.subr.mxu0 %v78
    %557 = vmatpush1.msra.mxu0 %v77
    %558 = vmatprep.subr.mxu0 %v70
    %559 = vmatpush1.msra.mxu0 %v69
    %560 = vmatprep.subr.mxu0 %v62
    %561 = vmatpush1.msra.mxu0 %v61
    %562 = vmatprep.subr.mxu0 %v54
    %563 = vmatpush1.msra.mxu0 %v53
    %564 = vmatprep.subr.mxu0 %v46
    %565 = vmatpush1.msra.mxu0 %v45
    %566 = vmatprep.subr.mxu0 %v38
    %567 = vmatpush1.msra.mxu0 %v37
    %568 = vmatprep.subr.mxu0 %v286
    %569 = vmatpush2.msra.mxu0 %v285
    %570 = vmatprep.subr.mxu0 %v278
    %571 = vmatpush2.msra.mxu0 %v277
    %572 = vmatprep.subr.mxu0 %v270
    %573 = vmatpush2.msra.mxu0 %v269
    %574 = vmatprep.subr.mxu0 %v262
    %575 = vmatpush2.msra.mxu0 %v261
    %576 = vmatprep.subr.mxu0 %v254
    %577 = vmatpush2.msra.mxu0 %v253
    %578 = vmatprep.subr.mxu0 %v246
    %579 = vmatpush2.msra.mxu0 %v245
    %580 = vmatprep.subr.mxu0 %v238
    %581 = vmatpush2.msra.mxu0 %v237
    %582 = vmatprep.subr.mxu0 %v230
    %583 = vmatpush2.msra.mxu0 %v229
    %584 = vmatprep.subr.mxu0 %v222
    %585 = vmatpush2.msra.mxu0 %v221
    %586 = vmatprep.subr.mxu0 %v214
    %587 = vmatpush2.msra.mxu0 %v213
    %588 = vmatprep.subr.mxu0 %v206
    %589 = vmatpush2.msra.mxu0 %v205
    %590 = vmatprep.subr.mxu0 %v198
    %591 = vmatpush2.msra.mxu0 %v197
    %592 = vmatprep.subr.mxu0 %v190
    %593 = vmatpush2.msra.mxu0 %v189
    %594 = vmatprep.subr.mxu0 %v182
    %595 = vmatpush2.msra.mxu0 %v181
    %596 = vmatprep.subr.mxu0 %v174
    %597 = vmatpush2.msra.mxu0 %v173
    %598 = vmatprep.subr.mxu0 %v166
    %599 = vmatpush2.msra.mxu0 %v165
    %600 = vmatprep.mubr.f32.mxu0 %v26
    %601 = vmatmul.mubr.f32.gmra.mxu0 %v25
    %v602 = vpop.f32.mrf.mxu0
    %v603 = vadd.f32 0.0, %v602
    %v604 = vpop.f32.mrf.mxu0
    %v605 = vadd.f32 0.0, %v604
    %606 = vmatprep.mubr.f32.mxu0 %v28
    %607 = vmatmul.mubr.f32.gmra.mxu0 %v27
    %v608 = vpop.f32.mrf.mxu0
    %v609 = vadd.f32 0.0, %v608
    %v610 = vpop.f32.mrf.mxu0
    %v611 = vadd.f32 0.0, %v610
    %612 = vmatprep.mubr.f32.mxu0 %v30
    %613 = vmatmul.mubr.f32.gmra.mxu0 %v29
    %v614 = vpop.f32.mrf.mxu0
    %v615 = vadd.f32 0.0, %v614
    %v616 = vpop.f32.mrf.mxu0
    %v617 = vadd.f32 0.0, %v616
    %618 = vdwg.mxu0
    %619 = vst [vmem:[%s2] sm:$0xff] %v354
    %620 = vst [vmem:[%s2 + $0x8] sm:$0xff] %v356
    %621 = vst [vmem:[%s2 + $0x10] sm:$0xff] %v437
    %622 = vst [vmem:[%s2 + $0x18] sm:$0xff] %v439
    %623 = vst [vmem:[%s2 + $0x20] sm:$0xff] %v520
    %624 = vst [vmem:[%s2 + $0x28] sm:$0xff] %v522
    %625 = vst [vmem:[%s2 + $0x30] sm:$0xff] %v603
    %626 = vst [vmem:[%s2 + $0x38] sm:$0xff] %v605
    %627 = vst [vmem:[%s2 + $0x40] sm:$0xff] %v360
    %628 = vst [vmem:[%s2 + $0x48] sm:$0xff] %v362
    %629 = vst [vmem:[%s2 + $0x50] sm:$0xff] %v443
    %630 = vst [vmem:[%s2 + $0x58] sm:$0xff] %v445
    %631 = vst [vmem:[%s2 + $0x60] sm:$0xff] %v526
    %632 = vst [vmem:[%s2 + $0x68] sm:$0xff] %v528
    %633 = vst [vmem:[%s2 + $0x70] sm:$0xff] %v609
    %634 = vst [vmem:[%s2 + $0x78] sm:$0xff] %v611
    %635 = vst [vmem:[%s2 + $0x80] sm:$0xff] %v366
    %636 = vst [vmem:[%s2 + $0x88] sm:$0xff] %v368
    %637 = vst [vmem:[%s2 + $0x90] sm:$0xff] %v449
    %638 = vst [vmem:[%s2 + $0x98] sm:$0xff] %v451
    %639 = vst [vmem:[%s2 + $0xa0] sm:$0xff] %v532
    %640 = vst [vmem:[%s2 + $0xa8] sm:$0xff] %v534
    %641 = vst [vmem:[%s2 + $0xb0] sm:$0xff] %v615
    %642 = vst [vmem:[%s2 + $0xb8] sm:$0xff] %v617
    // Predicated region
    $region14: #{set_upsample.1} parent=1 // pred_check
      _
    $region15: #{set_upsample.1} parent=1 // pred_check_branch
      %644 = sbr.rel (0) target = $region17
    $region16: #{set_upsample.1} parent=1 // pred_region
      _
    $region17: #{set_upsample.1} parent=1 // pred_fallthru
      _
    // Predicated region
    $region18: #{set_upsample.1} parent=1 // pred_check
      _
    $region19: #{set_upsample.1} parent=1 // pred_check_branch
      %646 = sbr.rel (0) target = $region21
    $region20: #{set_upsample.1} parent=1 // pred_region
      _
    $region21: #{set_upsample.1} parent=1 // pred_fallthru
      _
    %647 = vsyncpa [#allocation3], 1

</llo_original>
